<compile_context>
chip_gen: v5e
topology: v5e:2x2
jax: 0.10.0
libtpu: 0.0.40
codegen_flags: <defaults>
</compile_context>

<pallas_src>
import math

import jax
import jax.numpy as jnp
from jax.experimental import pallas as pl
from jax.experimental.pallas import tpu as pltpu


def _gaussian_kernel(a_ref, x_ref, o_ref):
    # a_ref: (1,) scalar parameter in SMEM.
    # x_ref / o_ref: (tm, N) lane-dense VMEM tiles.
    a = a_ref[0]
    c = -1.0 / (2.0 * a * a)  # scalar, folded out of the per-element path
    x = x_ref[...]
    o_ref[...] = jnp.exp(x * x * c).astype(o_ref.dtype)


def gaussian_activation(x, a):
    """Elementwise y = exp(-x^2 / (2*a^2)). x: any shape, a: (1,) float32."""
    orig_shape = x.shape
    T = math.prod(orig_shape)
    if T == 0:
        return x

    # --- Lane-dense layout: last dim is a large multiple of 128.
    N = 1024
    while N > 128 and T < N:
        N //= 2
    M = -(-T // N)  # rows needed (ceil)

    # --- Row tiling: target ~1-2 MiB blocks, grid >= 2 for large inputs
    #     (megacore on v7x), blocks small enough for every chip's VMEM budget.
    TM_TARGET = 512  # 512 x 1024 f32 = 2 MiB per block
    if M <= TM_TARGET:
        grid = 1
        tm = M  # full-dim block (legal even if not a multiple of 8)
    else:
        grid = -(-M // TM_TARGET)
        tm = -(-M // grid)
        tm = ((tm + 7) // 8) * 8  # sublane multiple
    Mp = grid * tm

    flat = x.reshape(-1)
    P = Mp * N
    if P != T:
        flat = jnp.pad(flat, (0, P - T))  # zero pad; sliced off below
    x2d = flat.reshape(Mp, N)

    block_bytes = tm * N * x.dtype.itemsize
    # 2 in + 2 out double-buffered blocks plus headroom; safe on v5e/v6e/v7x.
    vmem_limit = max(32 * 1024 * 1024, 4 * block_bytes + (4 << 20))

    out2d = pl.pallas_call(
        _gaussian_kernel,
        out_shape=jax.ShapeDtypeStruct((Mp, N), x.dtype),
        grid=(grid,),
        in_specs=[
            pl.BlockSpec(memory_space=pltpu.SMEM),    # a (scalar parameter)
            pl.BlockSpec((tm, N), lambda i: (i, 0)),  # x tile
        ],
        out_specs=pl.BlockSpec((tm, N), lambda i: (i, 0)),
        compiler_params=pltpu.CompilerParams(
            dimension_semantics=("parallel",),
            vmem_limit_bytes=vmem_limit,
        ),
    )(a, x2d)

    out = out2d.reshape(-1)
    if P != T:
        out = out[:T]
    return out.reshape(orig_shape)


if __name__ == "__main__":
    key = jax.random.PRNGKey(0)
    # Deterministic parameter init, matching nn.Parameter(a * torch.ones(1)) with a=1.0
    a_param = jnp.ones((1,), dtype=jnp.float32)

    # Small NCHW input consistent with an activation module
    x = jax.random.normal(key, (2, 4, 16, 16), dtype=jnp.float32)

    y = gaussian_activation(x, a_param)
    y = jax.block_until_ready(y)

    # Reference check (pure JAX)
    y_ref = jnp.exp(-(x ** 2) / (2.0 * a_param[0] ** 2))
    assert y.shape == x.shape and y.dtype == x.dtype
    assert jnp.allclose(y, y_ref, atol=1e-6, rtol=1e-6)

    print("KERNEL_OK")
</pallas_src>

<mosaic_0001>
module attributes {stable_mosaic.version = 11 : i64} {
  func.func @_gaussian_kernel(%arg0: i32, %arg1: memref<1xf32, #tpu.memory_space<smem>>, %arg2: memref<2x1024xf32, #tpu.memory_space<vmem>>, %arg3: memref<2x1024xf32, #tpu.memory_space<vmem>>) attributes {dimension_semantics = [#tpu.dimension_semantics<parallel>], iteration_bounds = array<i64: 1>, scalar_prefetch = 0 : i64, scratch_operands = 0 : i64, tpu.core_type = #tpu.core_type<tc>, window_params = [{transform_indices = @transform_0, window_bounds = array<i64: 1>}, {transform_indices = @transform_1, window_bounds = array<i64: 2, 1024>}, {transform_indices = @transform_2, window_bounds = array<i64: 2, 1024>}]} {
    %c0 = arith.constant 0 : index
    %0 = memref.load %arg1[%c0] : memref<1xf32, #tpu.memory_space<smem>>
    %cst = arith.constant 2.000000e+00 : f32
    %1 = arith.mulf %cst, %0 : f32
    %2 = arith.mulf %1, %0 : f32
    %cst_0 = arith.constant -1.000000e+00 : f32
    %3 = arith.divf %cst_0, %2 : f32
    %c0_1 = arith.constant 0 : index
    %c0_2 = arith.constant 0 : index
    %4 = vector.load %arg2[%c0_1, %c0_2] : memref<2x1024xf32, #tpu.memory_space<vmem>>, vector<2x1024xf32>
    %5 = arith.mulf %4, %4 : vector<2x1024xf32>
    %6 = vector.broadcast %3 : f32 to vector<2x1024xf32>
    %7 = arith.mulf %5, %6 : vector<2x1024xf32>
    %8 = math.exp %7 : vector<2x1024xf32>
    %c0_3 = arith.constant 0 : index
    %c0_4 = arith.constant 0 : index
    %9 = vector.load %arg3[%c0_3, %c0_4] : memref<2x1024xf32, #tpu.memory_space<vmem>>, vector<2x1024xf32>
    tpu.vector_store %arg3[%c0_3, %c0_4], %8 {strides = array<i32>} : memref<2x1024xf32, #tpu.memory_space<vmem>>, vector<2x1024xf32>,
    return
  }
  func.func @transform_0(%arg0: i32) -> i32 {
    %c0_i32 = arith.constant 0 : i32
    %c0_i32_0 = arith.constant 0 : i32
    return %c0_i32 : i32
  }
  func.func @transform_1(%arg0: i32) -> (i32, i32) {
    %c0_i32 = arith.constant 0 : i32
    %c0_i32_0 = arith.constant 0 : i32
    return %arg0, %c0_i32 : i32, i32
  }
  func.func @transform_2(%arg0: i32) -> (i32, i32) {
    %c0_i32 = arith.constant 0 : i32
    %c0_i32_0 = arith.constant 0 : i32
    return %arg0, %c0_i32 : i32, i32
  }
}

</mosaic_0001>

<llo_original>
// kernel: tpu_custom_call.1
$region0: #{tpu_custom_call.1}
  #allocation0 [shape = 'u32[]', space=smem, size = 0x4, offset = 0x4, fixed_abs, tag = 'smem constant byte address 0x4 - core index']
  #allocation1 [shape = 'u32[72,128]{1,0:T(1,128)}', space=vmem, size = 0x9000, scoped, tag = 'internal scratch']
  #allocation2 [shape = 'f32[1]{0:T(128)S(6)}', space=smem, size = 0x200, scoped, tag = 'scoped memory for tpu_custom_call.1']
  %s0 = inlined_call_operand.<no memory space> [shape: f32[1], index: 0, kind: input, shape index: {}]
  %s1 = inlined_call_operand.hbm [shape: f32[2,1024], index: 1, kind: input, shape index: {}]
  %s2 = inlined_call_operand.hbm [shape: f32[2,1024], index: 2, kind: output, shape index: {}]
  %s3 = sld [smem:[#allocation0]]
  $region22: #{tpu_custom_call.1} parent=0
    _
  %s5 = ssub.s32 1, %s3
  %s6 = scalar_select 0, %s5, %s3
  %7 = sst [smem:[#allocation2]] %s0
  $region1: #{tpu_custom_call.1} parent=0
    #allocation3 [shape = 'u8[8192]{0}', space=vmem, size = 0x2000, scoped, tag = 'input window, operand 1, single buffered']
    #allocation4 [shape = 's32[1]{0}', space=sflag, size = 0x4, scoped, tag = 'scoped memory for tpu_custom_call.1']
    #allocation5 [shape = 's32[1]{0}', space=sflag, size = 0x4, scoped, tag = 'scoped memory for tpu_custom_call.1']
    #allocation6 [shape = 'u8[8192]{0}', space=vmem, size = 0x2000, scoped, tag = 'output window, operand 0, single buffered']
    %8 = vsyncpa [#allocation4], 0
    %9 = vsyncpa [#allocation5], 0
    // Predicated region
    $region2: #{tpu_custom_call.1} parent=1 // pred_check
      _
    $region3: #{tpu_custom_call.1} parent=1 // pred_check_branch
      %11 = sbr.rel (0) target = $region5
    $region4: #{tpu_custom_call.1} parent=1 // pred_region
      _
    $region5: #{tpu_custom_call.1} parent=1 // pred_fallthru
      _
    // Predicated region
    $region6: #{tpu_custom_call.1} parent=1 // pred_check
      _
    $region7: #{tpu_custom_call.1} parent=1 // pred_check_branch
      %13 = sbr.rel (0) target = $region9
    $region8: #{tpu_custom_call.1} parent=1 // pred_region
      %15 = vsyncadd [#allocation4], 0
      %s17 = sshll.u32 %s1, 4
      %s18 = int_to_ptr.hbm [resolvable:$true] %s17
      %s19 = sshll.u32 [#allocation3], 4
      %s20 = int_to_ptr.vmem [resolvable:$true] %s19
      %22 = dma.hbm_to_vmem [thread:$0]  %s18, 256, %s20, [#allocation4]
    $region9: #{tpu_custom_call.1} parent=1 // pred_fallthru
      _
    // Predicated region
    $region10: #{tpu_custom_call.1} parent=1 // pred_check
      _
    $region11: #{tpu_custom_call.1} parent=1 // pred_check_branch
      %24 = sbr.rel (0) target = $region13
    $region12: #{tpu_custom_call.1} parent=1 // pred_region
      %26 = dma.done [#allocation4], 256
    $region13: #{tpu_custom_call.1} parent=1 // pred_fallthru
      _
    %s27 = sld [smem:[#allocation2]]
    %s28 = smul.f32 %s27, 2.0
    %s29 = smul.f32 %s28, %s27
    %v30 = vstv %s29
    %v31 = vrcp.pop %v30
    %v32 = vmul.f32 %v30, %v31
    %v33 = vsub.f32 1.0, %v32
    %v34 = vmul.f32 %v31, %v33
    %v35 = vadd.f32 %v31, %v34
    %vm36 = vweird.f32 %v30
    %vm37 = vweird.f32 %v31
    %vm38 = vmor %vm36, %vm37
    %v39 = vsel %vm38, %v31, %v35
    %v40 = vand.u32 2147483647, %v30
    %vm41 = vcmp.eq.f32.partialorder %v40, 8.507059e+37
    %v42 = vand.u32 %v30, 2147483648
    %v43 = vor.u32 1.1754944e-38, %v42
    %v44 = vsel %vm41, %v43, %v39
    %s45 = vtos %v44
    %s46 = smul.f32 -1.0, %s45
    %v47 = vld [vmem:[#allocation3] sm:$0xff]
    %v48 = vld [vmem:[#allocation3 + $0x8] sm:$0xff]
    %v49 = vmul.f32 %v47, %v47
    %v50 = vmul.f32 %v48, %v48
    %v51 = vstv %s46
    %v52 = vmul.f32 %v49, %v51
    %v53 = vmul.f32 %v50, %v51
    %v54 = vmul.f32 %v52, 1.442695
    %v55 = vpow.pop %v54
    %v56 = vmul.f32 %v53, 1.442695
    %v57 = vpow.pop %v56
    %58 = vst [vmem:[#allocation6] sm:$0xff] %v55
    %59 = vst [vmem:[#allocation6 + $0x8] sm:$0xff] %v57
    // Predicated region
    $region14: #{tpu_custom_call.1} parent=1 // pred_check
      _
    $region15: #{tpu_custom_call.1} parent=1 // pred_check_branch
      %61 = sbr.rel (0) target = $region17
    $region16: #{tpu_custom_call.1} parent=1 // pred_region
      %63 = vsyncadd [#allocation5], 0
      %s65 = sshll.u32 [#allocation6], 4
      %s66 = int_to_ptr.vmem [resolvable:$true] %s65
      %s67 = sshll.u32 %s2, 4
      %s68 = int_to_ptr.hbm [resolvable:$true] %s67
      %70 = dma.vmem_to_hbm [thread:$0]  %s66, 256, %s68, [#allocation5]
    $region17: #{tpu_custom_call.1} parent=1 // pred_fallthru
      _
    // Predicated region
    $region18: #{tpu_custom_call.1} parent=1 // pred_check
      _
    $region19: #{tpu_custom_call.1} parent=1 // pred_check_branch
      %72 = sbr.rel (0) target = $region21
    $region20: #{tpu_custom_call.1} parent=1 // pred_region
      %74 = dma.done [#allocation5], 256
    $region21: #{tpu_custom_call.1} parent=1 // pred_fallthru
      _
    %75 = vsyncpa [#allocation4], 1
    %76 = vsyncpa [#allocation5], 1

</llo_original>
